<compile_context>
chip_gen: v5e
topology: v5e:2x2
jax: 0.10.0
libtpu: 0.0.40
codegen_flags: <defaults>
</compile_context>

<pallas_src>
import jax
import jax.numpy as jnp
from jax.experimental import pallas as pl
from jax.experimental.pallas import tpu as pltpu

# [perf] VMEM budgeting: blocks are sized so that the double-buffered
# input+output footprint (~4 * B * C * HW * itemsize) stays well under the
# explicit limit below.  32 MiB is safe on v5e (128 MiB phys, raises its 16 MiB
# scoped default), v6e (128 MiB) and v7x (64 MiB phys / 32 MiB scoped default).
_VMEM_LIMIT_BYTES = 32 * 1024 * 1024
_BLOCK_VMEM_BUDGET = 8 * 1024 * 1024


def _pick_batch_block(n, c, hw, itemsize):
    """Batch elements per grid step.

    [perf] Batch several images per step so each DMA moves 100s of KiB instead
    of 32 KiB (the ~0.35us per-step overhead otherwise dominates), but keep at
    least 2 grid steps when possible so the "parallel" grid axis can shard
    across the two TensorCores of a v7x chip.
    """
    per_image = 4 * c * hw * itemsize            # in + out, double-buffered
    b = max(1, _BLOCK_VMEM_BUDGET // per_image)
    if n >= 2:
        b = min(b, max(1, n // 2))               # preserve >=2 parallel steps
    return int(min(b, n))


# ---------------------------------------------------------------------------
# Channel attention (CALayer used inside the HS blocks) — the reviewed kernel.
# ---------------------------------------------------------------------------
def ca_kernel(x_ref, w1t_ref, w2t_ref, o_ref):
    # x_ref block: (B, C, HW), HW lane-dense.
    # [perf] block indexed directly — no size-1 leading axis / x_ref[0] squeeze.
    xf = x_ref[...].astype(jnp.float32)          # bf16 inputs upcast once (f32 VPU work)
    bsz, c, hw = xf.shape

    # AdaptiveAvgPool2d(1): mean over HW, kept batched as (B, C).
    pooled = jnp.sum(xf, axis=-1) * (1.0 / hw)                               # (B, C)

    # [perf] squeeze-excite as (B,C)@(C,mid) and (B,mid)@(mid,C): no
    # lane-width-1 operands (weights pre-transposed in the wrapper).
    y1 = jnp.dot(pooled, w1t_ref[...], preferred_element_type=jnp.float32)   # (B, mid)
    y1 = jnp.maximum(y1, 0.0)                                                # ReLU
    y2 = jnp.dot(y1, w2t_ref[...], preferred_element_type=jnp.float32)       # (B, C)
    scale = jax.nn.sigmoid(y2)[:, :, None]                                   # (B, C, 1)

    # Broadcast the per-(batch, channel) scale over HW and apply.
    o_ref[...] = (xf * scale).astype(o_ref.dtype)


def ca_layer(x, w1, w2):
    """Channel attention.  x: (N, C, H, W); w1: (mid, C); w2: (C, mid).

    Equals x * sigmoid(conv1x1(relu(conv1x1(avgpool(x)))))  (bias-free convs).
    Accepts f32 or bf16 x; internals are f32, only the final store is cast.
    """
    n, c, h, w = x.shape
    hw = h * w
    # [perf] Keep H*W flattened on the last (lane) axis end-to-end: HW is a
    # multiple of 128 so stores stay unmasked / lane-dense.
    x_flat = x.reshape(n, c, hw)
    b = _pick_batch_block(n, c, hw, x_flat.dtype.itemsize)
    # [perf] Wrapper-side weight transposes (layout plumbing) so the in-kernel
    # dots use batched (B, C)/(B, mid) operands.
    w1_t = w1.T          # (C, mid)
    w2_t = w2.T          # (mid, C)

    # NOTE: for very large H*W the single-pass (C, HW) block would not fit
    # VMEM; then HW should get an innermost "arbitrary" reduction axis that
    # accumulates the pooled sum in scratch before a second scaling pass.
    # HSNet-sized maps fit comfortably, so the single-pass form is kept.
    out = pl.pallas_call(
        ca_kernel,
        out_shape=jax.ShapeDtypeStruct((n, c, hw), x.dtype),
        grid_spec=pltpu.PrefetchScalarGridSpec(
            num_scalar_prefetch=0,
            grid=(pl.cdiv(n, b),),
            in_specs=[
                pl.BlockSpec((b, c, hw), lambda i: (i, 0, 0)),
                pl.BlockSpec(w1_t.shape, lambda i: (0, 0)),
                pl.BlockSpec(w2_t.shape, lambda i: (0, 0)),
            ],
            out_specs=pl.BlockSpec((b, c, hw), lambda i: (i, 0, 0)),
        ),
        compiler_params=pltpu.CompilerParams(
            dimension_semantics=("parallel",),      # shards across v7x's 2 TCs
            vmem_limit_bytes=_VMEM_LIMIT_BYTES),
    )(x_flat, w1_t, w2_t)
    return out.reshape(n, c, h, w)


# ---------------------------------------------------------------------------
# 1x1 convolution (color_conv_in / color_conv_out), optionally fused with the
# residual add `color_x + color_feats` so the sum never round-trips HBM.
# ---------------------------------------------------------------------------
def conv1x1_kernel(x_ref, w_ref, o_ref):
    # x_ref: (B, Cin, HW), w_ref: (Cout, Cin), o_ref: (B, Cout, HW)
    w = w_ref[...].astype(jnp.float32)
    for bi in range(x_ref.shape[0]):              # static, small (B capped below)
        xb = x_ref[bi].astype(jnp.float32)
        o_ref[bi] = jnp.dot(w, xb, preferred_element_type=jnp.float32
                            ).astype(o_ref.dtype)


def conv1x1_residual_kernel(x_ref, r_ref, w_ref, o_ref):
    w = w_ref[...].astype(jnp.float32)
    for bi in range(x_ref.shape[0]):
        xb = x_ref[bi].astype(jnp.float32) + r_ref[bi].astype(jnp.float32)
        o_ref[bi] = jnp.dot(w, xb, preferred_element_type=jnp.float32
                            ).astype(o_ref.dtype)


def conv1x1(x, w, residual=None):
    """1x1 conv, bias=False.  x: (N, Cin, H, W), w: (Cout, Cin).

    If `residual` is given, computes  conv1x1(x + residual, w)  (fused add).
    """
    n, cin, h, wd = x.shape
    cout = w.shape[0]
    hw = h * wd
    x_flat = x.reshape(n, cin, hw)
    b = _pick_batch_block(n, max(cin, cout), hw, x_flat.dtype.itemsize)
    b = min(b, 8)                                 # per-image dot loop is unrolled
    x_spec = pl.BlockSpec((b, cin, hw), lambda i: (i, 0, 0))
    w_spec = pl.BlockSpec(w.shape, lambda i: (0, 0))
    o_spec = pl.BlockSpec((b, cout, hw), lambda i: (i, 0, 0))
    if residual is None:
        kernel, in_specs = conv1x1_kernel, [x_spec, w_spec]
        args = (x_flat, w)
    else:
        kernel = conv1x1_residual_kernel
        in_specs = [x_spec, x_spec, w_spec]
        args = (x_flat, residual.reshape(n, cin, hw), w)
    out = pl.pallas_call(
        kernel,
        out_shape=jax.ShapeDtypeStruct((n, cout, hw), x.dtype),
        grid_spec=pltpu.PrefetchScalarGridSpec(
            num_scalar_prefetch=0,
            grid=(pl.cdiv(n, b),),
            in_specs=in_specs,
            out_specs=o_spec,
        ),
        compiler_params=pltpu.CompilerParams(
            dimension_semantics=("parallel",),
            vmem_limit_bytes=_VMEM_LIMIT_BYTES),
    )(*args)
    return out.reshape(n, cout, h, wd)


# ---------------------------------------------------------------------------
# HSNet forward.
# ---------------------------------------------------------------------------
def hsnet_forward(x, w_in, w_ca1, w_ca2, w_out):
    """x: (N, 5, H, W) -> (color_feats (N, n_feat, H, W), color_out (N, 2, H, W))."""
    color_x = conv1x1(x, w_in)                                   # color_conv_in
    # TODO(synk): GroupHS(conv, n_feat, kernel_size, blocks=6) is not defined in
    # the provided spec; the channel-attention (CALayer) kernel from the HS
    # blocks stands in for the extractor body here.
    color_feats = ca_layer(color_x, w_ca1, w_ca2)                # color_extrator
    color_out = conv1x1(color_x, w_out, residual=color_feats)    # color_conv_out
    return color_feats, color_out


# ---------------------------------------------------------------------------
# Pure-JAX references.
# ---------------------------------------------------------------------------
def conv1x1_ref(x, w):
    return jnp.einsum("oc,nchw->nohw", w, x)


def ca_layer_ref(x, w1, w2):
    y = jnp.mean(x, axis=(2, 3), keepdims=True)
    y = jnp.einsum("mc,nchw->nmhw", w1, y)
    y = jnp.maximum(y, 0.0)
    y = jnp.einsum("cm,nmhw->nchw", w2, y)
    return x * jax.nn.sigmoid(y)


def hsnet_ref(x, w_in, w_ca1, w_ca2, w_out):
    color_x = conv1x1_ref(x, w_in)
    color_feats = ca_layer_ref(color_x, w_ca1, w_ca2)
    color_out = conv1x1_ref(color_x + color_feats, w_out)
    return color_feats, color_out


if __name__ == "__main__":
    N, CIN, H, W = 2, 5, 16, 16        # HSNet input has 5 channels
    n_feat = 32                        # small n_feat for the demo
    reduction = 16
    mid = n_feat // reduction          # 2

    key = jax.random.PRNGKey(0)
    kx, kin, k1, k2, kout = jax.random.split(key, 5)
    x = jax.random.normal(kx, (N, CIN, H, W), dtype=jnp.float32)
    w_in = jax.random.normal(kin, (n_feat, CIN), dtype=jnp.float32) * 0.1
    w_ca1 = jax.random.normal(k1, (mid, n_feat), dtype=jnp.float32) * 0.1
    w_ca2 = jax.random.normal(k2, (n_feat, mid), dtype=jnp.float32) * 0.1
    w_out = jax.random.normal(kout, (2, n_feat), dtype=jnp.float32) * 0.1

    feats, out = jax.block_until_ready(hsnet_forward(x, w_in, w_ca1, w_ca2, w_out))
    feats_ref, out_ref = hsnet_ref(x, w_in, w_ca1, w_ca2, w_out)
    assert feats.shape == (N, n_feat, H, W) and out.shape == (N, 2, H, W)
    # Tolerance covers the TPU default-precision f32 matmul (bf16 passes).
    assert jnp.allclose(feats, feats_ref, atol=5e-3, rtol=5e-2)
    assert jnp.allclose(out, out_ref, atol=5e-3, rtol=5e-2)

    # [perf] bf16 I/O path for the HBM-bound channel-attention kernel
    # (compute stays f32; only the final store is cast).
    cx_bf16 = conv1x1_ref(x, w_in).astype(jnp.bfloat16)
    feats_bf16 = jax.block_until_ready(ca_layer(cx_bf16, w_ca1, w_ca2))
    ref_bf16 = ca_layer_ref(cx_bf16.astype(jnp.float32), w_ca1, w_ca2)
    assert feats_bf16.dtype == jnp.bfloat16
    assert jnp.allclose(feats_bf16.astype(jnp.float32), ref_bf16, atol=5e-2, rtol=5e-2)

    print("KERNEL_OK")
</pallas_src>

<mosaic_0001>
module attributes {stable_mosaic.version = 11 : i64} {
  func.func @conv1x1_kernel(%arg0: i32, %arg1: memref<1x5x256xf32, #tpu.memory_space<vmem>>, %arg2: memref<32x5xf32, #tpu.memory_space<vmem>>, %arg3: memref<1x32x256xf32, #tpu.memory_space<vmem>>) attributes {dimension_semantics = [#tpu.dimension_semantics<parallel>], iteration_bounds = array<i64: 2>, scalar_prefetch = 0 : i64, scratch_operands = 0 : i64, tpu.core_type = #tpu.core_type<tc>, window_params = [{transform_indices = @transform_0, window_bounds = array<i64: 1, 5, 256>}, {pipeline_mode = #tpu.pipeline_mode<synchronous>, transform_indices = @transform_1, window_bounds = array<i64: 32, 5>}, {transform_indices = @transform_2, window_bounds = array<i64: 1, 32, 256>}]} {
    %c0 = arith.constant 0 : index
    %c0_0 = arith.constant 0 : index
    %0 = vector.load %arg2[%c0, %c0_0] : memref<32x5xf32, #tpu.memory_space<vmem>>, vector<32x5xf32>
    %c0_1 = arith.constant 0 : index
    %c0_2 = arith.constant 0 : index
    %c0_3 = arith.constant 0 : index
    %1 = vector.load %arg1[%c0_1, %c0_2, %c0_3] : memref<1x5x256xf32, #tpu.memory_space<vmem>>, vector<1x5x256xf32>
    %2 = vector.shape_cast %1 : vector<1x5x256xf32> to vector<5x256xf32>
    %cst = arith.constant dense<0.000000e+00> : vector<32x256xf32>
    %3 = tpu.matmul %0, %2, %cst {dimension_numbers = #tpu.dot_dimension_numbers<[1], [0], [0], [1], [0, 0, 1, 1], [], []>} : vector<32x5xf32>, vector<5x256xf32>, vector<32x256xf32> -> vector<32x256xf32>
    %c0_4 = arith.constant 0 : index
    %c0_5 = arith.constant 0 : index
    %c0_6 = arith.constant 0 : index
    %4 = vector.load %arg3[%c0_4, %c0_5, %c0_6] : memref<1x32x256xf32, #tpu.memory_space<vmem>>, vector<1x32x256xf32>
    %5 = vector.shape_cast %4 : vector<1x32x256xf32> to vector<32x256xf32>
    %6 = vector.shape_cast %3 : vector<32x256xf32> to vector<1x32x256xf32>
    tpu.vector_store %arg3[%c0_4, %c0_5, %c0_6], %6 {strides = array<i32>} : memref<1x32x256xf32, #tpu.memory_space<vmem>>, vector<1x32x256xf32>,
    return
  }
  func.func @transform_0(%arg0: i32) -> (i32, i32, i32) {
    %c0_i32 = arith.constant 0 : i32
    %c0_i32_0 = arith.constant 0 : i32
    %c0_i32_1 = arith.constant 0 : i32
    return %arg0, %c0_i32, %c0_i32_0 : i32, i32, i32
  }
  func.func @transform_1(%arg0: i32) -> (i32, i32) {
    %c0_i32 = arith.constant 0 : i32
    %c0_i32_0 = arith.constant 0 : i32
    %c0_i32_1 = arith.constant 0 : i32
    return %c0_i32, %c0_i32_0 : i32, i32
  }
  func.func @transform_2(%arg0: i32) -> (i32, i32, i32) {
    %c0_i32 = arith.constant 0 : i32
    %c0_i32_0 = arith.constant 0 : i32
    %c0_i32_1 = arith.constant 0 : i32
    return %arg0, %c0_i32, %c0_i32_0 : i32, i32, i32
  }
}

</mosaic_0001>

<llo_original>
// kernel: tpu_custom_call.1
$region0: #{tpu_custom_call.1}
  #allocation0 [shape = 'u32[]', space=smem, size = 0x4, offset = 0x4, fixed_abs, tag = 'smem constant byte address 0x4 - core index']
  #allocation1 [shape = 'u32[72,128]{1,0:T(1,128)}', space=vmem, size = 0x9000, scoped, tag = 'internal scratch']
  %s0 = inlined_call_operand.vmem [shape: f32[2,5,256], index: 0, kind: input, shape index: {}]
  %s1 = inlined_call_operand.vmem [shape: f32[32,5], index: 1, kind: input, shape index: {}]
  %s2 = inlined_call_operand.hbm [shape: f32[2,32,256], index: 2, kind: output, shape index: {}]
  %s3 = sld [smem:[#allocation0]]
  $region41: #{tpu_custom_call.1} parent=0
    _
  %s5 = ssub.s32 1, %s3
  %s6 = scalar_select 0, %s5, %s3
  $region1: #{tpu_custom_call.1} parent=0
    #allocation2 [shape = 'u8[65536]{0}', space=vmem, size = 0x10000, scoped, tag = 'output window, operand 0']
    #allocation3 [shape = 's32[2]{0}', space=sflag, size = 0x8, scoped, tag = 'scoped memory for tpu_custom_call.1']
    %7 = vsyncpa [#allocation3], 0
    %s8 = scalar_lea.sflag [#allocation3], 1
    %9 = vsyncpa %s8, 0
    loop: start=0, step=1, limit=4
    $region2: #{tpu_custom_call.1} parent=1 // loop_pre_header
      _
    $region3: #{tpu_custom_call.1} parent=1 // loop_header
      %s11 = sphi 0, %s15
      %p12 = scmp.ge.s32.totalorder %s11, 4
      %s21 = sphi 0, %s23
      %s24 = sphi 0, %s21
      %s25 = sphi 0, %s24
      %s41 = sphi 0, %s25
      %s45 = sphi 0, %s45
      %s47 = sphi 0, %s45
      %s48 = sphi 0, %s47
      %s62 = sphi 0, %s48
      %s68 = sphi 0, %s70
      %s71 = sphi 0, %s68
      %s72 = sphi 0, %s71
      %s88 = sphi 0, %s72
    $region4: #{tpu_custom_call.1} parent=1 // loop_header_branch
      %14 = sbr.rel (%p12) target = $region8
    $region5: #{tpu_custom_call.1} parent=1 // loop_body
      %s16 = ssub.s32 %s11, 1
      %s17 = ssub.s32 %s11, 2
      %s18 = sadd.s32 %s11, 1
      %s19 = ssub.s32 %s11, %s18
      %p20 = scmp.eq.s32.totalorder %s19, 0
      %s22 = sadd.s32 %s21, 1
      %s23 = scalar_select %p20, %s21, %s22
      %p26 = pneg %p20
      %p27 = scmp.eq.s32.totalorder %s11, 1
      %p28 = por %p26, %p27
      %p29 = scmp.ne.s32.totalorder %s21, %s24
      %p30 = scmp.eq.s32.totalorder %s11, 0
      %p31 = por %p29, %p30
      %p32 = scmp.ne.s32.totalorder %s21, %s24
      %p33 = scmp.eq.s32.totalorder %s16, 1
      %p34 = por %p32, %p33
      %p35 = scmp.ne.s32.totalorder %s24, %s25
      %p36 = scmp.eq.s32.totalorder %s16, 0
      %p37 = por %p35, %p36
      %p38 = scmp.ne.s32.totalorder %s24, %s25
      %p39 = scmp.eq.s32.totalorder %s17, 1
      %p40 = por %p38, %p39
      %p42 = scmp.ne.s32.totalorder %s25, %s41
      %p43 = scmp.eq.s32.totalorder %s17, 0
      %p44 = por %p42, %p43
      %s46 = sadd.s32 %s45, 1
      %p49 = scmp.eq.s32.totalorder %s11, 1
      %p50 = scmp.ne.s32.totalorder %s45, %s47
      %p51 = scmp.eq.s32.totalorder %s11, 0
      %p52 = por %p50, %p51
      %p53 = scmp.ne.s32.totalorder %s45, %s47
      %p54 = scmp.eq.s32.totalorder %s16, 1
      %p55 = por %p53, %p54
      %p56 = scmp.ne.s32.totalorder %s47, %s48
      %p57 = scmp.eq.s32.totalorder %s16, 0
      %p58 = por %p56, %p57
      %p59 = scmp.ne.s32.totalorder %s47, %s48
      %p60 = scmp.eq.s32.totalorder %s17, 1
      %p61 = por %p59, %p60
      %p63 = scmp.ne.s32.totalorder %s48, %s62
      %p64 = scmp.eq.s32.totalorder %s17, 0
      %p65 = por %p63, %p64
      %s66 = ssub.s32 %s11, %s18
      %p67 = scmp.eq.s32.totalorder %s66, 0
      %s69 = sadd.s32 %s68, 1
      %s70 = scalar_select %p67, %s68, %s69
      %p73 = pneg %p67
      %p74 = scmp.eq.s32.totalorder %s11, 1
      %p75 = por %p73, %p74
      %p76 = scmp.ne.s32.totalorder %s68, %s71
      %p77 = scmp.eq.s32.totalorder %s11, 0
      %p78 = por %p76, %p77
      %p79 = scmp.ne.s32.totalorder %s68, %s71
      %p80 = scmp.eq.s32.totalorder %s16, 1
      %p81 = por %p79, %p80
      %p82 = scmp.ne.s32.totalorder %s71, %s72
      %p83 = scmp.eq.s32.totalorder %s16, 0
      %p84 = por %p82, %p83
      %p85 = scmp.ne.s32.totalorder %s71, %s72
      %p86 = scmp.eq.s32.totalorder %s17, 1
      %p87 = por %p85, %p86
      %p89 = scmp.ne.s32.totalorder %s72, %s88
      %p90 = scmp.eq.s32.totalorder %s17, 0
      %p91 = por %p89, %p90
      %p92 = scmp.le.s32.totalorder 1, %s11
      %p93 = scmp.lt.s32.totalorder %s11, 3
      %p94 = pnand %p92, %p93
      %p95 = pneg %p94
      // Predicated region
      $region9: #{tpu_custom_call.1} parent=5 // pred_check
        _
      $region10: #{tpu_custom_call.1} parent=5 // pred_check_branch
        %97 = sbr.rel (%p94) target = $region12
      $region11: #{tpu_custom_call.1} parent=5 // pred_region
        %s98 = ssub.s32 %s11, 1
        // Predicated region
        $region13: #{tpu_custom_call.1} parent=11 // pred_check
          %p99 = pneg %p58
        $region14: #{tpu_custom_call.1} parent=11 // pred_check_branch
          %101 = sbr.rel (%p99) target = $region16
        $region15: #{tpu_custom_call.1} parent=11 // pred_region
          _
        $region16: #{tpu_custom_call.1} parent=11 // pred_fallthru
          _
      $region12: #{tpu_custom_call.1} parent=5 // pred_fallthru
        _
      %p102 = scmp.lt.s32.totalorder %s11, 2
      // Predicated region
      $region17: #{tpu_custom_call.1} parent=5 // pred_check
        %p103 = pneg %p102
      $region18: #{tpu_custom_call.1} parent=5 // pred_check_branch
        %105 = sbr.rel (%p103) target = $region20
      $region19: #{tpu_custom_call.1} parent=5 // pred_region
        // Predicated region
        $region21: #{tpu_custom_call.1} parent=19 // pred_check
          %p106 = pneg %p31
        $region22: #{tpu_custom_call.1} parent=19 // pred_check_branch
          %108 = sbr.rel (%p106) target = $region24
        $region23: #{tpu_custom_call.1} parent=19 // pred_region
          %p109 = scmp.lt.s32.totalorder %s11, 1
          %s110 = scalar_select %p109, %s11, 1
          %s111 = smul.addr %s110, 2
          %s112 = smul.addr %s111, 8
          %s113 = scalar_lea.vmem %s0, %s112
        $region24: #{tpu_custom_call.1} parent=19 // pred_fallthru
          _
      $region20: #{tpu_custom_call.1} parent=5 // pred_fallthru
        _
      %p114 = scmp.le.s32.totalorder 1, %s11
      %p115 = scmp.lt.s32.totalorder %s11, 3
      %p116 = pnand %p114, %p115
      %p117 = pneg %p116
      // Predicated region
      $region25: #{tpu_custom_call.1} parent=5 // pred_check
        _
      $region26: #{tpu_custom_call.1} parent=5 // pred_check_branch
        %119 = sbr.rel (%p116) target = $region28
      $region27: #{tpu_custom_call.1} parent=5 // pred_region
        %s120 = ssub.s32 %s11, 1
        %p121 = scmp.lt.s32.totalorder %s16, 1
        %s122 = scalar_select %p121, %s16, 1
        %s123 = smul.addr %s122, 2
        %s124 = smul.addr %s123, 8
        %s125 = scalar_lea.vmem %s0, %s124
        %p126 = pneg %p37
        %p127 = pneg %p34
        %p128 = pneg %p58
        %p129 = pneg %p55
        %p130 = pneg %p84
        %p131 = pneg %p81
        %s132 = sand.u32 %s71, 1
        %s133 = scalar_lea.sflag [#allocation3], %s132
        %s134 = sand.u32 %s71, 1
        %s135 = smul.addr %s134, 64
        %s136 = scalar_lea.vmem [#allocation2], %s135
        %p137 = scmp.lt.s32.totalorder %s16, 1
        %s138 = scalar_select %p137, %s16, 1
        %s139 = smul.addr %s138, 2
        %s140 = smul.addr %s139, 8
        %s141 = scalar_lea.vmem %s0, %s140
        %v142 = vld [vmem:[%s1] sm:$0xff]
        %v143 = vld [vmem:[%s1 + $0x8] sm:$0xff]
        %v144 = vld [vmem:[%s1 + $0x10] sm:$0xff]
        %v145 = vld [vmem:[%s1 + $0x18] sm:$0xff]
        %v146 = vld [vmem:[%s141] sm:$0x1f]
        %v147 = vld [vmem:[%s141 + $0x8] sm:$0x1f]
        %vm148 = vcmask 39936
        %v150 = vsel %vm148, %v142, 0
        %v153 = vsel %vm148, %v143, 0
        %v156 = vsel %vm148, %v144, 0
        %v159 = vsel %vm148, %v145, 0
        %vm161 = vcmask 1044480
        %v163 = vsel %vm161, %v146, 0
        %v166 = vsel %vm161, %v147, 0
        %168 = vmatpush.msra.mxu0 0.0
        %169 = vmatpush.msra.mxu0 0.0
        %170 = vmatpush.msra.mxu0 0.0
        %171 = vmatpush.msra.mxu0 0.0
        %172 = vmatpush.msra.mxu0 0.0
        %173 = vmatpush.msra.mxu0 0.0
        %174 = vmatpush.msra.mxu0 0.0
        %175 = vmatpush.msra.mxu0 0.0
        %176 = vmatpush.msra.mxu0 0.0
        %177 = vmatpush.msra.mxu0 0.0
        %178 = vmatpush.msra.mxu0 0.0
        %179 = vmatpush.msra.mxu0 0.0
        %180 = vmatpush.msra.mxu0 0.0
        %181 = vmatpush.msra.mxu0 0.0
        %182 = vmatpush.msra.mxu0 0.0
        %183 = vmatpush.msra.mxu0 %v163
        %184 = vmatmul.f32.gmra.mxu0 %v150
        %v185 = vpop.f32.mrf.mxu0
        %v186 = vadd.f32 0.0, %v185
        %187 = vmatmul.f32.gmra.mxu0 %v153
        %v188 = vpop.f32.mrf.mxu0
        %v189 = vadd.f32 0.0, %v188
        %190 = vmatmul.f32.gmra.mxu0 %v156
        %v191 = vpop.f32.mrf.mxu0
        %v192 = vadd.f32 0.0, %v191
        %193 = vmatmul.f32.gmra.mxu0 %v159
        %v194 = vpop.f32.mrf.mxu0
        %v195 = vadd.f32 0.0, %v194
        %196 = vdwg.mxu0
        %197 = vmatpush.msra.mxu0 0.0
        %198 = vmatpush.msra.mxu0 0.0
        %199 = vmatpush.msra.mxu0 0.0
        %200 = vmatpush.msra.mxu0 0.0
        %201 = vmatpush.msra.mxu0 0.0
        %202 = vmatpush.msra.mxu0 0.0
        %203 = vmatpush.msra.mxu0 0.0
        %204 = vmatpush.msra.mxu0 0.0
        %205 = vmatpush.msra.mxu0 0.0
        %206 = vmatpush.msra.mxu0 0.0
        %207 = vmatpush.msra.mxu0 0.0
        %208 = vmatpush.msra.mxu0 0.0
        %209 = vmatpush.msra.mxu0 0.0
        %210 = vmatpush.msra.mxu0 0.0
        %211 = vmatpush.msra.mxu0 0.0
        %212 = vmatpush.msra.mxu0 %v166
        %213 = vmatmul.f32.gmra.mxu0 %v150
        %v214 = vpop.f32.mrf.mxu0
        %v215 = vadd.f32 0.0, %v214
        %216 = vmatmul.f32.gmra.mxu0 %v153
        %v217 = vpop.f32.mrf.mxu0
        %v218 = vadd.f32 0.0, %v217
        %219 = vmatmul.f32.gmra.mxu0 %v156
        %v220 = vpop.f32.mrf.mxu0
        %v221 = vadd.f32 0.0, %v220
        %222 = vmatmul.f32.gmra.mxu0 %v159
        %v223 = vpop.f32.mrf.mxu0
        %v224 = vadd.f32 0.0, %v223
        %225 = vdwg.mxu0
        %226 = vst [vmem:[%s136] sm:$0xff] %v186
        %227 = vst [vmem:[%s136 + $0x8] sm:$0xff] %v215
        %228 = vst [vmem:[%s136 + $0x10] sm:$0xff] %v189
        %229 = vst [vmem:[%s136 + $0x18] sm:$0xff] %v218
        %230 = vst [vmem:[%s136 + $0x20] sm:$0xff] %v192
        %231 = vst [vmem:[%s136 + $0x28] sm:$0xff] %v221
        %232 = vst [vmem:[%s136 + $0x30] sm:$0xff] %v195
        %233 = vst [vmem:[%s136 + $0x38] sm:$0xff] %v224
        %s234 = sand.u32 %s71, 1
        %s235 = scalar_lea.sflag [#allocation3], %s234
        %s236 = sand.u32 %s71, 1
        %s237 = smul.addr %s236, 64
        %s238 = scalar_lea.vmem [#allocation2], %s237
        // Predicated region
        $region29: #{tpu_custom_call.1} parent=27 // pred_check
          %p239 = pneg %p81
        $region30: #{tpu_custom_call.1} parent=27 // pred_check_branch
          %241 = sbr.rel (%p239) target = $region32
        $region31: #{tpu_custom_call.1} parent=27 // pred_region
          %243 = vsyncadd %s235, 0
          %s244 = smul.addr %s16, 8
          %s245 = smul.addr %s244, 8
          %s246 = scalar_lea.hbm %s2, %s245
          %s247 = sshll.u32 %s238, 4
          %s248 = int_to_ptr.vmem [resolvable:$true] %s247
          %s249 = sshll.u32 %s246, 4
          %s250 = int_to_ptr.hbm [resolvable:$true] %s249
          %255 = dma.vmem_to_hbm [thread:$0]  %s248, 1024, %s250, %s235, 256, 256, 16
        $region32: #{tpu_custom_call.1} parent=27 // pred_fallthru
          _
      $region28: #{tpu_custom_call.1} parent=5 // pred_fallthru
        _
      %p256 = scmp.le.s32.totalorder 2, %s11
      // Predicated region
      $region33: #{tpu_custom_call.1} parent=5 // pred_check
        %p257 = pneg %p256
      $region34: #{tpu_custom_call.1} parent=5 // pred_check_branch
        %259 = sbr.rel (%p257) target = $region36
      $region35: #{tpu_custom_call.1} parent=5 // pred_region
        %s260 = ssub.s32 %s11, 2
        // Predicated region
        $region37: #{tpu_custom_call.1} parent=35 // pred_check
          %p261 = pneg %p87
        $region38: #{tpu_custom_call.1} parent=35 // pred_check_branch
          %263 = sbr.rel (%p261) target = $region40
        $region39: #{tpu_custom_call.1} parent=35 // pred_region
          %s264 = sand.u32 %s72, 1
          %s265 = scalar_lea.sflag [#allocation3], %s264
          %s266 = sand.u32 %s72, 1
          %s267 = smul.addr %s266, 64
          %s268 = scalar_lea.vmem [#allocation2], %s267
          %270 = dma.done %s265, 1024
        $region40: #{tpu_custom_call.1} parent=35 // pred_fallthru
          _
      $region36: #{tpu_custom_call.1} parent=5 // pred_fallthru
        _
    $region6: #{tpu_custom_call.1} parent=1 // loop_footer
      %s15 = sadd.s32 1, %s11
    $region7: #{tpu_custom_call.1} parent=1 // loop_footer_branch
      %10 = sbr.rel target = $region3
    $region8: #{tpu_custom_call.1} parent=1 // loop_exit
      _
    %271 = vsyncpa [#allocation3], 1
    %s272 = scalar_lea.sflag [#allocation3], 1
    %273 = vsyncpa %s272, 1

</llo_original>
